<compile_context>
chip_gen: v7x
topology: tpu7x:2x2x1
jax: 0.10.0
libtpu: 0.0.40
codegen_flags: <defaults>
</compile_context>

<pallas_src>
import functools

import jax
import jax.numpy as jnp
from jax.experimental import pallas as pl
from jax.experimental.pallas import tpu as pltpu


def _round_up(v, k):
    return ((v + k - 1) // k) * k


# ---------------------------------------------------------------------------
# Kernel
# ---------------------------------------------------------------------------
def _mbp_kernel(x_ref, wa_ref, b1_ref, w2_ref, b2_ref, w3_ref, b3_ref, out_ref,
                *, hid):
    cdt = wa_ref.dtype                                       # MXU operand dtype
    x = x_ref[...]                                           # (TB, n), already cdt

    # Fused first matmul: [W1.T | K.T] -> one MXU pass, x vregs reused once.
    h = jnp.dot(x, wa_ref[...],
                preferred_element_type=jnp.float32)          # (TB, hid + MP) f32

    lin = h[:, hid:]                                         # (TB, MP) = x @ K.T (padded)
    h1 = jnp.maximum(h[:, :hid] + b1_ref[...], 0.0)          # (TB, hid) f32

    h2 = jnp.dot(h1.astype(cdt), w2_ref[...],
                 preferred_element_type=jnp.float32) + b2_ref[...]
    h2 = jnp.maximum(h2, 0.0)                                # (TB, hid) f32

    net = jnp.dot(h2.astype(cdt), w3_ref[...],
                  preferred_element_type=jnp.float32) + b3_ref[...]   # (TB, MP)

    out_ref[...] = (lin + net).astype(out_ref.dtype)


# ---------------------------------------------------------------------------
# One-time parameter preparation (hoisted out of the hot path)
# ---------------------------------------------------------------------------
def prepare_mbp_params(K, W1, b1, W2, b2, W3, b3, compute_dtype=jnp.float32):
    """Torch-convention params (out,in)/(out,) -> padded, fused, (in,out) layout.

    Returns (m, prepared_tuple).  Zero padding is exact through Linear+ReLU, so
    semantics are unchanged; pad lanes are dropped in the wrapper (or by the
    consumer when return_padded=True).
    """
    m, n = K.shape
    H = W1.shape[0]                          # 200
    hid = _round_up(H, 128)                  # 200 -> 256 (fills 256-wide MXU)
    # Output width: lane-dense, and a multiple of 256 once m > 128 so v6e/v7x
    # MXU passes are not half-empty.
    mp = 128 if m <= 128 else _round_up(m, 256)

    f32 = jnp.float32
    # Fused layer-1 weight: columns [0:hid) = W1.T (padded), [hid:hid+mp) = K.T.
    w1t = jnp.zeros((n, hid), f32).at[:, :H].set(W1.T.astype(f32))
    kt = jnp.zeros((n, mp), f32).at[:, :m].set(K.T.astype(f32))
    wa = jnp.concatenate([w1t, kt], axis=1).astype(compute_dtype)      # (n, hid+mp)

    b1p = jnp.zeros((1, hid), f32).at[:, :H].set(b1.astype(f32)[None, :])
    w2p = (jnp.zeros((hid, hid), f32).at[:H, :H].set(W2.T.astype(f32))
           .astype(compute_dtype))
    b2p = jnp.zeros((1, hid), f32).at[:, :H].set(b2.astype(f32)[None, :])
    w3p = (jnp.zeros((hid, mp), f32).at[:H, :m].set(W3.T.astype(f32))
           .astype(compute_dtype))
    b3p = jnp.zeros((1, mp), f32).at[:, :m].set(b3.astype(f32)[None, :])

    prepared = (wa, b1p, w2p, b2p, w3p, b3p)
    return m, prepared


# ---------------------------------------------------------------------------
# Batch tiling
# ---------------------------------------------------------------------------
_TB_MAX = 4096           # review: 1024-4096; multiple of 8
_SPLIT_THRESHOLD = 1024  # above this, ensure >=2 grid steps (v7x megacore)
_VMEM_BUDGET = 28 * 1024 * 1024   # streamed blocks + intermediates budget


def _choose_tile(B, n, hid, mp, x_itemsize, out_itemsize):
    # Per-row VMEM: double-buffered x/out blocks + f32 intermediates (h,h1,h2).
    per_row = (2 * n * x_itemsize
               + 2 * mp * out_itemsize
               + (hid + mp) * 4
               + 2 * hid * 4)
    tb_cap = max(8, min(_TB_MAX, (_VMEM_BUDGET // per_row) // 8 * 8))
    if B <= min(tb_cap, _SPLIT_THRESHOLD):
        return B                                   # one block; full-dim => legal shape
    # Large batch: split so both v7x TensorCores get work, capped by VMEM.
    return min(tb_cap, _round_up(pl.cdiv(B, 2), 8))


# ---------------------------------------------------------------------------
# Forward
# ---------------------------------------------------------------------------
def mbp_policy_forward(x, prepared, m, *, return_padded=False,
                       out_dtype=jnp.float32):
    """x: (B, n); prepared: output of prepare_mbp_params.

    Returns (B, m) by default (PyTorch semantics).  Pass return_padded=True to
    get the lane-dense (B, mp) buffer and skip the extra slicing copy (the
    first m lanes hold the result, pad lanes are exact garbage-free zeros of
    the padded weights plus pad biases = 0).
    """
    wa, b1p, w2p, b2p, w3p, b3p = prepared
    B, n = x.shape
    hid = b1p.shape[1]
    mp = b3p.shape[1]

    # Stream activations at the MXU operand dtype (bf16 path halves x HBM
    # traffic; the dot rounded x to bf16 anyway, so numerics are unchanged).
    if x.dtype != wa.dtype:
        x = x.astype(wa.dtype)
    x_item = jnp.dtype(x.dtype).itemsize
    out_item = jnp.dtype(out_dtype).itemsize

    tb = _choose_tile(B, n, hid, mp, x_item, out_item)
    grid = (pl.cdiv(B, tb),)

    def _resident(arr):  # weights/biases: same block every grid step
        return pl.BlockSpec(arr.shape, lambda i: (0, 0))

    w_item = jnp.dtype(wa.dtype).itemsize
    cost = pl.CostEstimate(
        flops=2 * B * (n * (hid + mp) + hid * hid + hid * mp),
        transcendentals=0,
        bytes_accessed=(B * n * x_item
                        + B * mp * out_item
                        + (wa.size + w2p.size + w3p.size) * w_item
                        + (b1p.size + b2p.size + b3p.size) * 4),
    )

    out = pl.pallas_call(
        functools.partial(_mbp_kernel, hid=hid),
        out_shape=jax.ShapeDtypeStruct((B, mp), out_dtype),
        grid=grid,
        in_specs=[
            pl.BlockSpec((tb, n), lambda i: (i, 0)),   # x: batch-tiled
            _resident(wa), _resident(b1p),
            _resident(w2p), _resident(b2p),
            _resident(w3p), _resident(b3p),
        ],
        out_specs=pl.BlockSpec((tb, mp), lambda i: (i, 0)),
        compiler_params=pltpu.CompilerParams(
            dimension_semantics=("parallel",),
            vmem_limit_bytes=48 * 1024 * 1024,
        ),
        cost_estimate=cost,
    )(x, wa, b1p, w2p, b2p, w3p, b3p)

    if return_padded or mp == m:
        return out
    return out[:, :m]


# ---------------------------------------------------------------------------
# Init / reference / self-test
# ---------------------------------------------------------------------------
def _init_params(key, n, m):
    """Deterministic init mimicking torch.nn.Linear default (uniform +-1/sqrt(fan_in))."""
    ks = jax.random.split(key, 8)

    def lin_init(kw, kb, fan_in, fan_out):
        bound = 1.0 / jnp.sqrt(fan_in)
        W = jax.random.uniform(kw, (fan_out, fan_in), jnp.float32, -bound, bound)
        b = jax.random.uniform(kb, (fan_out,), jnp.float32, -bound, bound)
        return W, b

    K = jax.random.normal(ks[0], (m, n), jnp.float32) * 0.1
    W1, b1 = lin_init(ks[1], ks[2], n, 200)
    W2, b2 = lin_init(ks[3], ks[4], 200, 200)
    W3, b3 = lin_init(ks[5], ks[6], 200, m)
    return K, W1, b1, W2, b2, W3, b3


def _reference(x, K, W1, b1, W2, b2, W3, b3):
    h1 = jnp.maximum(x @ W1.T + b1, 0.0)
    h2 = jnp.maximum(h1 @ W2.T + b2, 0.0)
    return x @ K.T + (h2 @ W3.T + b3)


if __name__ == "__main__":
    batch, n, m = 8, 32, 16
    key = jax.random.PRNGKey(0)
    kx, kp, kbig = jax.random.split(key, 3)

    x = jax.random.normal(kx, (batch, n), jnp.float32)
    K, W1, b1, W2, b2, W3, b3 = _init_params(kp, n, m)
    ref = _reference(x, K, W1, b1, W2, b2, W3, b3)

    # f32 path: matches the PyTorch-convention reference.
    m_out, prep_f32 = prepare_mbp_params(K, W1, b1, W2, b2, W3, b3, jnp.float32)
    out = jax.block_until_ready(mbp_policy_forward(x, prep_f32, m_out))
    assert out.shape == (batch, m)
    assert jnp.allclose(out, ref, atol=1e-4, rtol=1e-4), "f32 mismatch vs reference"

    # Slice-free padded-output path (consumer indexes the first m lanes).
    out_pad = jax.block_until_ready(
        mbp_policy_forward(x, prep_f32, m_out, return_padded=True))
    assert out_pad.shape[0] == batch and out_pad.shape[1] % 128 == 0
    assert jnp.allclose(out_pad[:, :m], ref, atol=1e-4, rtol=1e-4), \
        "padded-output mismatch vs reference"

    # bf16 MXU-operand path: x streamed bf16, f32 accumulate + f32 element-wise.
    _, prep_bf16 = prepare_mbp_params(K, W1, b1, W2, b2, W3, b3, jnp.bfloat16)
    out_bf = jax.block_until_ready(mbp_policy_forward(x, prep_bf16, m_out))
    assert out_bf.shape == (batch, m)
    assert jnp.allclose(out_bf, ref, atol=5e-2, rtol=5e-2), "bf16 mismatch vs reference"

    # Large batch: exercises multi-step "parallel" grid + ragged last tile.
    big_b = 2050
    xb = jax.random.normal(kbig, (big_b, n), jnp.float32)
    refb = _reference(xb, K, W1, b1, W2, b2, W3, b3)
    outb = jax.block_until_ready(mbp_policy_forward(xb, prep_f32, m_out))
    assert outb.shape == (big_b, m)
    assert jnp.allclose(outb, refb, atol=1e-4, rtol=1e-4), "large-batch mismatch"

    print("KERNEL_OK")
</pallas_src>

<mosaic_0001>
module attributes {stable_mosaic.version = 11 : i64} {
  func.func @_mbp_kernel(%arg0: i32, %arg1: memref<8x32xf32, #tpu.memory_space<vmem>>, %arg2: memref<32x384xf32, #tpu.memory_space<vmem>>, %arg3: memref<1x256xf32, #tpu.memory_space<vmem>>, %arg4: memref<256x256xf32, #tpu.memory_space<vmem>>, %arg5: memref<1x256xf32, #tpu.memory_space<vmem>>, %arg6: memref<256x128xf32, #tpu.memory_space<vmem>>, %arg7: memref<1x128xf32, #tpu.memory_space<vmem>>, %arg8: memref<8x128xf32, #tpu.memory_space<vmem>>) attributes {dimension_semantics = [#tpu.dimension_semantics<parallel>], iteration_bounds = array<i64: 1>, scalar_prefetch = 0 : i64, scratch_operands = 0 : i64, tpu.core_type = #tpu.core_type<tc>, window_params = [{transform_indices = @transform_0, window_bounds = array<i64: 8, 32>}, {pipeline_mode = #tpu.pipeline_mode<synchronous>, transform_indices = @transform_1, window_bounds = array<i64: 32, 384>}, {pipeline_mode = #tpu.pipeline_mode<synchronous>, transform_indices = @transform_2, window_bounds = array<i64: 1, 256>}, {pipeline_mode = #tpu.pipeline_mode<synchronous>, transform_indices = @transform_3, window_bounds = array<i64: 256, 256>}, {pipeline_mode = #tpu.pipeline_mode<synchronous>, transform_indices = @transform_4, window_bounds = array<i64: 1, 256>}, {pipeline_mode = #tpu.pipeline_mode<synchronous>, transform_indices = @transform_5, window_bounds = array<i64: 256, 128>}, {pipeline_mode = #tpu.pipeline_mode<synchronous>, transform_indices = @transform_6, window_bounds = array<i64: 1, 128>}, {transform_indices = @transform_7, window_bounds = array<i64: 8, 128>}]} {
    %c0 = arith.constant 0 : index
    %c0_0 = arith.constant 0 : index
    %0 = vector.load %arg1[%c0, %c0_0] : memref<8x32xf32, #tpu.memory_space<vmem>>, vector<8x32xf32>
    %c0_1 = arith.constant 0 : index
    %c0_2 = arith.constant 0 : index
    %1 = vector.load %arg2[%c0_1, %c0_2] : memref<32x384xf32, #tpu.memory_space<vmem>>, vector<32x384xf32>
    %cst = arith.constant dense<0.000000e+00> : vector<8x384xf32>
    %2 = tpu.matmul %0, %1, %cst {dimension_numbers = #tpu.dot_dimension_numbers<[1], [0], [0], [1], [0, 0, 1, 1], [], []>} : vector<8x32xf32>, vector<32x384xf32>, vector<8x384xf32> -> vector<8x384xf32>
    %3 = vector.extract_strided_slice %2 {offsets = [0, 256], sizes = [8, 128], strides = [1, 1]} : vector<8x384xf32> to vector<8x128xf32>
    %4 = vector.extract_strided_slice %2 {offsets = [0, 0], sizes = [8, 256], strides = [1, 1]} : vector<8x384xf32> to vector<8x256xf32>
    %c0_3 = arith.constant 0 : index
    %c0_4 = arith.constant 0 : index
    %5 = vector.load %arg3[%c0_3, %c0_4] : memref<1x256xf32, #tpu.memory_space<vmem>>, vector<1x256xf32>
    %6 = vector.broadcast %5 : vector<1x256xf32> to vector<8x256xf32>
    %7 = arith.addf %4, %6 : vector<8x256xf32>
    %cst_5 = arith.constant 0.000000e+00 : f32
    %8 = vector.broadcast %cst_5 : f32 to vector<8x256xf32>
    %9 = arith.maximumf %7, %8 : vector<8x256xf32>
    %c0_6 = arith.constant 0 : index
    %c0_7 = arith.constant 0 : index
    %10 = vector.load %arg4[%c0_6, %c0_7] : memref<256x256xf32, #tpu.memory_space<vmem>>, vector<256x256xf32>
    %cst_8 = arith.constant dense<0.000000e+00> : vector<8x256xf32>
    %11 = tpu.matmul %9, %10, %cst_8 {dimension_numbers = #tpu.dot_dimension_numbers<[1], [0], [0], [1], [0, 0, 1, 1], [], []>} : vector<8x256xf32>, vector<256x256xf32>, vector<8x256xf32> -> vector<8x256xf32>
    %c0_9 = arith.constant 0 : index
    %c0_10 = arith.constant 0 : index
    %12 = vector.load %arg5[%c0_9, %c0_10] : memref<1x256xf32, #tpu.memory_space<vmem>>, vector<1x256xf32>
    %13 = vector.broadcast %12 : vector<1x256xf32> to vector<8x256xf32>
    %14 = arith.addf %11, %13 : vector<8x256xf32>
    %cst_11 = arith.constant 0.000000e+00 : f32
    %15 = vector.broadcast %cst_11 : f32 to vector<8x256xf32>
    %16 = arith.maximumf %14, %15 : vector<8x256xf32>
    %c0_12 = arith.constant 0 : index
    %c0_13 = arith.constant 0 : index
    %17 = vector.load %arg6[%c0_12, %c0_13] : memref<256x128xf32, #tpu.memory_space<vmem>>, vector<256x128xf32>
    %cst_14 = arith.constant dense<0.000000e+00> : vector<8x128xf32>
    %18 = tpu.matmul %16, %17, %cst_14 {dimension_numbers = #tpu.dot_dimension_numbers<[1], [0], [0], [1], [0, 0, 1, 1], [], []>} : vector<8x256xf32>, vector<256x128xf32>, vector<8x128xf32> -> vector<8x128xf32>
    %c0_15 = arith.constant 0 : index
    %c0_16 = arith.constant 0 : index
    %19 = vector.load %arg7[%c0_15, %c0_16] : memref<1x128xf32, #tpu.memory_space<vmem>>, vector<1x128xf32>
    %20 = vector.broadcast %19 : vector<1x128xf32> to vector<8x128xf32>
    %21 = arith.addf %18, %20 : vector<8x128xf32>
    %22 = arith.addf %3, %21 : vector<8x128xf32>
    %c0_17 = arith.constant 0 : index
    %c0_18 = arith.constant 0 : index
    %23 = vector.load %arg8[%c0_17, %c0_18] : memref<8x128xf32, #tpu.memory_space<vmem>>, vector<8x128xf32>
    tpu.vector_store %arg8[%c0_17, %c0_18], %22 {strides = array<i32>} : memref<8x128xf32, #tpu.memory_space<vmem>>, vector<8x128xf32>,
    return
  }
  func.func @transform_0(%arg0: i32) -> (i32, i32) {
    %c0_i32 = arith.constant 0 : i32
    %c0_i32_0 = arith.constant 0 : i32
    return %arg0, %c0_i32 : i32, i32
  }
  func.func @transform_1(%arg0: i32) -> (i32, i32) {
    %c0_i32 = arith.constant 0 : i32
    %c0_i32_0 = arith.constant 0 : i32
    %c0_i32_1 = arith.constant 0 : i32
    return %c0_i32, %c0_i32_0 : i32, i32
  }
  func.func @transform_2(%arg0: i32) -> (i32, i32) {
    %c0_i32 = arith.constant 0 : i32
    %c0_i32_0 = arith.constant 0 : i32
    %c0_i32_1 = arith.constant 0 : i32
    return %c0_i32, %c0_i32_0 : i32, i32
  }
  func.func @transform_3(%arg0: i32) -> (i32, i32) {
    %c0_i32 = arith.constant 0 : i32
    %c0_i32_0 = arith.constant 0 : i32
    %c0_i32_1 = arith.constant 0 : i32
    return %c0_i32, %c0_i32_0 : i32, i32
  }
  func.func @transform_4(%arg0: i32) -> (i32, i32) {
    %c0_i32 = arith.constant 0 : i32
    %c0_i32_0 = arith.constant 0 : i32
    %c0_i32_1 = arith.constant 0 : i32
    return %c0_i32, %c0_i32_0 : i32, i32
  }
  func.func @transform_5(%arg0: i32) -> (i32, i32) {
    %c0_i32 = arith.constant 0 : i32
    %c0_i32_0 = arith.constant 0 : i32
    %c0_i32_1 = arith.constant 0 : i32
    return %c0_i32, %c0_i32_0 : i32, i32
  }
  func.func @transform_6(%arg0: i32) -> (i32, i32) {
    %c0_i32 = arith.constant 0 : i32
    %c0_i32_0 = arith.constant 0 : i32
    %c0_i32_1 = arith.constant 0 : i32
    return %c0_i32, %c0_i32_0 : i32, i32
  }
  func.func @transform_7(%arg0: i32) -> (i32, i32) {
    %c0_i32 = arith.constant 0 : i32
    %c0_i32_0 = arith.constant 0 : i32
    return %arg0, %c0_i32 : i32, i32
  }
}

</mosaic_0001>

<llo_original>
// kernel: tpu_custom_call.1
$region0: #{tpu_custom_call.1}
  #allocation0 [shape = 'u32[]', space=smem, size = 0x4, offset = 0x4, fixed_abs, tag = 'smem constant byte address 0x4 - core index']
  #allocation1 [shape = 'u32[144,128]{1,0:T(1,128)}', space=vmem, size = 0x12000, scoped, tag = 'internal scratch']
  %s0 = inlined_call_operand.hbm [shape: f32[8,32], index: 0, kind: input, shape index: {}]
  %s1 = inlined_call_operand.hbm [shape: f32[32,384], index: 1, kind: input, shape index: {}]
  %s2 = inlined_call_operand.vmem [shape: f32[1,256], index: 2, kind: input, shape index: {}]
  %s3 = inlined_call_operand.hbm [shape: f32[256,256], index: 3, kind: input, shape index: {}]
  %s4 = inlined_call_operand.vmem [shape: f32[1,256], index: 4, kind: input, shape index: {}]
  %s5 = inlined_call_operand.hbm [shape: f32[256,128], index: 5, kind: input, shape index: {}]
  %s6 = inlined_call_operand.vmem [shape: f32[1,128], index: 6, kind: input, shape index: {}]
  %s7 = inlined_call_operand.hbm [shape: f32[8,128], index: 7, kind: output, shape index: {}]
  %s8 = sld [smem:[#allocation0]]
  $region54: #{tpu_custom_call.1} parent=0
    _
  %s10 = ssub.s32 1, %s8
  %s11 = scalar_select 0, %s10, %s8
  $region1: #{tpu_custom_call.1} parent=0
    #allocation2 [shape = 'u8[4096]{0}', space=vmem, size = 0x1000, scoped, tag = 'input window, operand 0, single buffered']
    #allocation3 [shape = 's32[1]{0}', space=sflag, size = 0x4, scoped, tag = 'scoped memory for tpu_custom_call.1']
    #allocation4 [shape = 's32[1]{0}', space=sflag, size = 0x4, scoped, tag = 'scoped memory for tpu_custom_call.1']
    #allocation5 [shape = 'u8[49152]{0}', space=vmem, size = 0xc000, scoped, tag = 'input window, operand 1, single buffered']
    #allocation6 [shape = 's32[1]{0}', space=sflag, size = 0x4, scoped, tag = 'scoped memory for tpu_custom_call.1']
    #allocation7 [shape = 'u8[262144]{0}', space=vmem, size = 0x40000, scoped, tag = 'input window, operand 3, single buffered']
    #allocation8 [shape = 'u8[131072]{0}', space=vmem, size = 0x20000, scoped, tag = 'input window, operand 5, single buffered']
    #allocation9 [shape = 's32[1]{0}', space=sflag, size = 0x4, scoped, tag = 'scoped memory for tpu_custom_call.1']
    #allocation10 [shape = 'u8[4096]{0}', space=vmem, size = 0x1000, scoped, tag = 'output window, operand 0, single buffered']
    %12 = vsyncpa [#allocation3], 0
    %13 = vsyncpa [#allocation6], 0
    %14 = vsyncpa [#allocation9], 0
    %15 = vsyncpa [#allocation4], 0
    // Predicated region
    $region2: #{tpu_custom_call.1} parent=1 // pred_check
      _
    $region3: #{tpu_custom_call.1} parent=1 // pred_check_branch
      %17 = sbr.rel (0) target = $region5
    $region4: #{tpu_custom_call.1} parent=1 // pred_region
      %s19 = ssub.s32 128, 128
      %20 = vsyncadd [#allocation3], %s19
      %s22 = sshll.u32 [#allocation2], 4
      %s23 = int_to_ptr.vmem [resolvable:$true] %s22
      %25 = dma.hbm_to_vmem [thread:$0]  %s0, 128, %s23, [#allocation3]
    $region5: #{tpu_custom_call.1} parent=1 // pred_fallthru
      _
    // Predicated region
    $region6: #{tpu_custom_call.1} parent=1 // pred_check
      _
    $region7: #{tpu_custom_call.1} parent=1 // pred_check_branch
      %27 = sbr.rel (0) target = $region9
    $region8: #{tpu_custom_call.1} parent=1 // pred_region
      %s29 = ssub.s32 1536, 1536
      %30 = vsyncadd [#allocation6], %s29
      %s31 = sshll.u32 [#allocation5], 4
      %s32 = int_to_ptr.vmem [resolvable:$true] %s31
      %37 = dma.hbm_to_vmem [thread:$0]  %s1, 1536, %s32, [#allocation6], 384, 384, 24
    $region9: #{tpu_custom_call.1} parent=1 // pred_fallthru
      _
    // Predicated region
    $region10: #{tpu_custom_call.1} parent=1 // pred_check
      _
    $region11: #{tpu_custom_call.1} parent=1 // pred_check_branch
      %39 = sbr.rel (0) target = $region13
    $region12: #{tpu_custom_call.1} parent=1 // pred_region
      _
    $region13: #{tpu_custom_call.1} parent=1 // pred_fallthru
      _
    // Predicated region
    $region14: #{tpu_custom_call.1} parent=1 // pred_check
      _
    $region15: #{tpu_custom_call.1} parent=1 // pred_check_branch
      %41 = sbr.rel (0) target = $region17
    $region16: #{tpu_custom_call.1} parent=1 // pred_region
      %s43 = ssub.s32 8192, 8192
      %44 = vsyncadd [#allocation6], %s43
      %s45 = sshll.u32 [#allocation7], 4
      %s46 = int_to_ptr.vmem [resolvable:$true] %s45
      %51 = dma.hbm_to_vmem [thread:$0]  %s3, 8192, %s46, [#allocation6], 256, 256, 16
    $region17: #{tpu_custom_call.1} parent=1 // pred_fallthru
      _
    // Predicated region
    $region18: #{tpu_custom_call.1} parent=1 // pred_check
      _
    $region19: #{tpu_custom_call.1} parent=1 // pred_check_branch
      %53 = sbr.rel (0) target = $region21
    $region20: #{tpu_custom_call.1} parent=1 // pred_region
      _
    $region21: #{tpu_custom_call.1} parent=1 // pred_fallthru
      _
    // Predicated region
    $region22: #{tpu_custom_call.1} parent=1 // pred_check
      _
    $region23: #{tpu_custom_call.1} parent=1 // pred_check_branch
      %55 = sbr.rel (0) target = $region25
    $region24: #{tpu_custom_call.1} parent=1 // pred_region
      %s57 = ssub.s32 4096, 4096
      %58 = vsyncadd [#allocation9], %s57
      %s59 = sshll.u32 [#allocation8], 4
      %s60 = int_to_ptr.vmem [resolvable:$true] %s59
      %65 = dma.hbm_to_vmem [thread:$0]  %s5, 4096, %s60, [#allocation9], 128, 128, 8
    $region25: #{tpu_custom_call.1} parent=1 // pred_fallthru
      _
    // Predicated region
    $region26: #{tpu_custom_call.1} parent=1 // pred_check
      _
    $region27: #{tpu_custom_call.1} parent=1 // pred_check_branch
      %67 = sbr.rel (0) target = $region29
    $region28: #{tpu_custom_call.1} parent=1 // pred_region
      _
    $region29: #{tpu_custom_call.1} parent=1 // pred_fallthru
      _
    // Predicated region
    $region30: #{tpu_custom_call.1} parent=1 // pred_check
      _
    $region31: #{tpu_custom_call.1} parent=1 // pred_check_branch
      %69 = sbr.rel (0) target = $region33
    $region32: #{tpu_custom_call.1} parent=1 // pred_region
      %70 = dma.done [#allocation3], 128
    $region33: #{tpu_custom_call.1} parent=1 // pred_fallthru
      _
    // Predicated region
    $region34: #{tpu_custom_call.1} parent=1 // pred_check
      _
    $region35: #{tpu_custom_call.1} parent=1 // pred_check_branch
      %72 = sbr.rel (0) target = $region37
    $region36: #{tpu_custom_call.1} parent=1 // pred_region
      %73 = dma.done [#allocation6], 1536
    $region37: #{tpu_custom_call.1} parent=1 // pred_fallthru
      _
    // Predicated region
    $region38: #{tpu_custom_call.1} parent=1 // pred_check
      _
    $region39: #{tpu_custom_call.1} parent=1 // pred_check_branch
      %75 = sbr.rel (0) target = $region41
    $region40: #{tpu_custom_call.1} parent=1 // pred_region
      %76 = dma.done [#allocation6], 8192
    $region41: #{tpu_custom_call.1} parent=1 // pred_fallthru
      _
    // Predicated region
    $region42: #{tpu_custom_call.1} parent=1 // pred_check
      _
    $region43: #{tpu_custom_call.1} parent=1 // pred_check_branch
      %78 = sbr.rel (0) target = $region45
    $region44: #{tpu_custom_call.1} parent=1 // pred_region
      %79 = dma.done [#allocation9], 4096
    $region45: #{tpu_custom_call.1} parent=1 // pred_fallthru
      _
    %v80 = vld [vmem:[#allocation2] sm:$0xff]
    %v81 = vld [vmem:[#allocation5] sm:$0xff]
    %v82 = vld [vmem:[#allocation5 + $0x8] sm:$0xff]
    %v83 = vld [vmem:[#allocation5 + $0x10] sm:$0xff]
    %v84 = vld [vmem:[#allocation5 + $0x18] sm:$0xff]
    %v85 = vld [vmem:[#allocation5 + $0x20] sm:$0xff]
    %v86 = vld [vmem:[#allocation5 + $0x28] sm:$0xff]
    %v87 = vld [vmem:[#allocation5 + $0x30] sm:$0xff]
    %v88 = vld [vmem:[#allocation5 + $0x38] sm:$0xff]
    %v89 = vld [vmem:[#allocation5 + $0x40] sm:$0xff]
    %v90 = vld [vmem:[#allocation5 + $0x48] sm:$0xff]
    %v91 = vld [vmem:[#allocation5 + $0x50] sm:$0xff]
    %v92 = vld [vmem:[#allocation5 + $0x58] sm:$0xff]
    %vm93 = vcmask 261120
    %v95 = vsel %vm93, %v80, 0
    %97 = vmatprep.subr.mxu0 %v82
    %98 = vmatpush1.msra.mxu0 %v81
    %99 = vmatprep.subr.mxu0 %v85
    %100 = vmatpush1.msra.mxu0 %v84
    %101 = vmatprep.subr.mxu0 %v88
    %102 = vmatpush1.msra.mxu0 %v87
    %103 = vmatprep.subr.mxu0 %v91
    %104 = vmatpush1.msra.mxu0 %v90
    %105 = vmatprep.subr.mxu0 0.0
    %106 = vmatpush1.msra.mxu0 0.0
    %107 = vmatprep.subr.mxu0 0.0
    %108 = vmatpush1.msra.mxu0 0.0
    %109 = vmatprep.subr.mxu0 0.0
    %110 = vmatpush1.msra.mxu0 0.0
    %111 = vmatprep.subr.mxu0 0.0
    %112 = vmatpush1.msra.mxu0 0.0
    %113 = vmatprep.subr.mxu0 0.0
    %114 = vmatpush1.msra.mxu0 0.0
    %115 = vmatprep.subr.mxu0 0.0
    %116 = vmatpush1.msra.mxu0 0.0
    %117 = vmatprep.subr.mxu0 0.0
    %118 = vmatpush1.msra.mxu0 0.0
    %119 = vmatprep.subr.mxu0 0.0
    %120 = vmatpush1.msra.mxu0 0.0
    %121 = vmatprep.subr.mxu0 0.0
    %122 = vmatpush1.msra.mxu0 0.0
    %123 = vmatprep.subr.mxu0 0.0
    %124 = vmatpush1.msra.mxu0 0.0
    %125 = vmatprep.subr.mxu0 0.0
    %126 = vmatpush1.msra.mxu0 0.0
    %127 = vmatprep.subr.mxu0 0.0
    %128 = vmatpush1.msra.mxu0 0.0
    %129 = vmatprep.subr.mxu0 0.0
    %130 = vmatpush1.msra.mxu0 0.0
    %131 = vmatprep.subr.mxu0 0.0
    %132 = vmatpush1.msra.mxu0 0.0
    %133 = vmatprep.subr.mxu0 0.0
    %134 = vmatpush1.msra.mxu0 0.0
    %135 = vmatprep.subr.mxu0 0.0
    %136 = vmatpush1.msra.mxu0 0.0
    %137 = vmatprep.subr.mxu0 0.0
    %138 = vmatpush1.msra.mxu0 0.0
    %139 = vmatprep.subr.mxu0 0.0
    %140 = vmatpush1.msra.mxu0 0.0
    %141 = vmatprep.subr.mxu0 0.0
    %142 = vmatpush1.msra.mxu0 0.0
    %143 = vmatprep.subr.mxu0 0.0
    %144 = vmatpush1.msra.mxu0 0.0
    %145 = vmatprep.subr.mxu0 0.0
    %146 = vmatpush1.msra.mxu0 0.0
    %147 = vmatprep.subr.mxu0 0.0
    %148 = vmatpush1.msra.mxu0 0.0
    %149 = vmatprep.subr.mxu0 0.0
    %150 = vmatpush1.msra.mxu0 0.0
    %151 = vmatprep.subr.mxu0 0.0
    %152 = vmatpush1.msra.mxu0 0.0
    %153 = vmatprep.subr.mxu0 0.0
    %154 = vmatpush1.msra.mxu0 0.0
    %155 = vmatprep.subr.mxu0 0.0
    %156 = vmatpush1.msra.mxu0 0.0
    %157 = vmatprep.subr.mxu0 0.0
    %158 = vmatpush1.msra.mxu0 0.0
    %159 = vmatprep.subr.mxu0 0.0
    %160 = vmatpush1.msra.mxu0 0.0
    %161 = vmatprep.mubr.f32.mxu0 0.0
    %162 = vmatmul.mubr.f32.gmra.mrb[0].mxu0 %v95
    %v163 = vpop.f32.mrb[0].mxu0
    %v164 = vadd.f32 0.0, %v163
    %v165 = vpop.f32.mrb[0].mxu0
    %v166 = vadd.f32 0.0, %v165
    %167 = vdwg.mxu0
    %168 = vmatprep.subr.mxu0 0.0
    %169 = vmatpush1.msra.mxu0 %v83
    %170 = vmatprep.subr.mxu0 0.0
    %171 = vmatpush1.msra.mxu0 %v86
    %172 = vmatprep.subr.mxu0 0.0
    %173 = vmatpush1.msra.mxu0 %v89
    %174 = vmatprep.subr.mxu0 0.0
    %175 = vmatpush1.msra.mxu0 %v92
    %176 = vmatprep.subr.mxu0 0.0
    %177 = vmatpush1.msra.mxu0 0.0
    %178 = vmatprep.subr.mxu0 0.0
    %179 = vmatpush1.msra.mxu0 0.0
    %180 = vmatprep.subr.mxu0 0.0
    %181 = vmatpush1.msra.mxu0 0.0
    %182 = vmatprep.subr.mxu0 0.0
    %183 = vmatpush1.msra.mxu0 0.0
    %184 = vmatprep.subr.mxu0 0.0
    %185 = vmatpush1.msra.mxu0 0.0
    %186 = vmatprep.subr.mxu0 0.0
    %187 = vmatpush1.msra.mxu0 0.0
    %188 = vmatprep.subr.mxu0 0.0
    %189 = vmatpush1.msra.mxu0 0.0
    %190 = vmatprep.subr.mxu0 0.0
    %191 = vmatpush1.msra.mxu0 0.0
    %192 = vmatprep.subr.mxu0 0.0
    %193 = vmatpush1.msra.mxu0 0.0
    %194 = vmatprep.subr.mxu0 0.0
    %195 = vmatpush1.msra.mxu0 0.0
    %196 = vmatprep.subr.mxu0 0.0
    %197 = vmatpush1.msra.mxu0 0.0
    %198 = vmatprep.subr.mxu0 0.0
    %199 = vmatpush1.msra.mxu0 0.0
    %200 = vmatprep.subr.mxu0 0.0
    %201 = vmatpush1.msra.mxu0 0.0
    %202 = vmatprep.subr.mxu0 0.0
    %203 = vmatpush1.msra.mxu0 0.0
    %204 = vmatprep.subr.mxu0 0.0
    %205 = vmatpush1.msra.mxu0 0.0
    %206 = vmatprep.subr.mxu0 0.0
    %207 = vmatpush1.msra.mxu0 0.0
    %208 = vmatprep.subr.mxu0 0.0
    %209 = vmatpush1.msra.mxu0 0.0
    %210 = vmatprep.subr.mxu0 0.0
    %211 = vmatpush1.msra.mxu0 0.0
    %212 = vmatprep.subr.mxu0 0.0
    %213 = vmatpush1.msra.mxu0 0.0
    %214 = vmatprep.subr.mxu0 0.0
    %215 = vmatpush1.msra.mxu0 0.0
    %216 = vmatprep.subr.mxu0 0.0
    %217 = vmatpush1.msra.mxu0 0.0
    %218 = vmatprep.subr.mxu0 0.0
    %219 = vmatpush1.msra.mxu0 0.0
    %220 = vmatprep.subr.mxu0 0.0
    %221 = vmatpush1.msra.mxu0 0.0
    %222 = vmatprep.subr.mxu0 0.0
    %223 = vmatpush1.msra.mxu0 0.0
    %224 = vmatprep.subr.mxu0 0.0
    %225 = vmatpush1.msra.mxu0 0.0
    %226 = vmatprep.subr.mxu0 0.0
    %227 = vmatpush1.msra.mxu0 0.0
    %228 = vmatprep.subr.mxu0 0.0
    %229 = vmatpush1.msra.mxu0 0.0
    %230 = vmatprep.subr.mxu0 0.0
    %231 = vmatpush1.msra.mxu0 0.0
    %232 = vmatprep.mubr.f32.mxu0 0.0
    %233 = vmatmul.mubr.f32.gmra.mrb[0].mxu0 %v95
    %v234 = vpop.f32.mrb[0].mxu0
    %v235 = vadd.f32 0.0, %v234
    %v236 = vpop.f32.mrb[0].mxu0
    %237 = vdwg.mxu0
    %v238 = vld [vmem:[%s2] sm:$0x3]
    %v240 = vlaneseq
    %v241 = vshrl.u32 %v240, 7
    %v242 = vsub.s32 0, %v241
    %v243 = vrot.slane %v238, %v242
    %v244 = vlaneseq
    %v245 = vshrl.u32 %v244, 7
    %v246 = vsub.s32 1, %v245
    %v247 = vrot.slane %v238, %v246
    %v250 = vadd.f32 %v164, %v243
    %v251 = vadd.f32 %v166, %v247
    %v252 = vmax.f32 %v250, 0.0
    %v253 = vmax.f32 %v251, 0.0
    %v254 = vld [vmem:[#allocation7] sm:$0xff]
    %v255 = vld [vmem:[#allocation7 + $0x8] sm:$0xff]
    %v256 = vld [vmem:[#allocation7 + $0x10] sm:$0xff]
    %v257 = vld [vmem:[#allocation7 + $0x18] sm:$0xff]
    %v258 = vld [vmem:[#allocation7 + $0x20] sm:$0xff]
    %v259 = vld [vmem:[#allocation7 + $0x28] sm:$0xff]
    %v260 = vld [vmem:[#allocation7 + $0x30] sm:$0xff]
    %v261 = vld [vmem:[#allocation7 + $0x38] sm:$0xff]
    %v262 = vld [vmem:[#allocation7 + $0x40] sm:$0xff]
    %v263 = vld [vmem:[#allocation7 + $0x48] sm:$0xff]
    %v264 = vld [vmem:[#allocation7 + $0x50] sm:$0xff]
    %v265 = vld [vmem:[#allocation7 + $0x58] sm:$0xff]
    %v266 = vld [vmem:[#allocation7 + $0x60] sm:$0xff]
    %v267 = vld [vmem:[#allocation7 + $0x68] sm:$0xff]
    %v268 = vld [vmem:[#allocation7 + $0x70] sm:$0xff]
    %v269 = vld [vmem:[#allocation7 + $0x78] sm:$0xff]
    %v270 = vld [vmem:[#allocation7 + $0x80] sm:$0xff]
    %v271 = vld [vmem:[#allocation7 + $0x88] sm:$0xff]
    %v272 = vld [vmem:[#allocation7 + $0x90] sm:$0xff]
    %v273 = vld [vmem:[#allocation7 + $0x98] sm:$0xff]
    %v274 = vld [vmem:[#allocation7 + $0xa0] sm:$0xff]
    %v275 = vld [vmem:[#allocation7 + $0xa8] sm:$0xff]
    %v276 = vld [vmem:[#allocation7 + $0xb0] sm:$0xff]
    %v277 = vld [vmem:[#allocation7 + $0xb8] sm:$0xff]
    %v278 = vld [vmem:[#allocation7 + $0xc0] sm:$0xff]
    %v279 = vld [vmem:[#allocation7 + $0xc8] sm:$0xff]
    %v280 = vld [vmem:[#allocation7 + $0xd0] sm:$0xff]
    %v281 = vld [vmem:[#allocation7 + $0xd8] sm:$0xff]
    %v282 = vld [vmem:[#allocation7 + $0xe0] sm:$0xff]
    %v283 = vld [vmem:[#allocation7 + $0xe8] sm:$0xff]
    %v284 = vld [vmem:[#allocation7 + $0xf0] sm:$0xff]
    %v285 = vld [vmem:[#allocation7 + $0xf8] sm:$0xff]
    %v286 = vld [vmem:[#allocation7 + $0x100] sm:$0xff]
    %v287 = vld [vmem:[#allocation7 + $0x108] sm:$0xff]
    %v288 = vld [vmem:[#allocation7 + $0x110] sm:$0xff]
    %v289 = vld [vmem:[#allocation7 + $0x118] sm:$0xff]
    %v290 = vld [vmem:[#allocation7 + $0x120] sm:$0xff]
    %v291 = vld [vmem:[#allocation7 + $0x128] sm:$0xff]
    %v292 = vld [vmem:[#allocation7 + $0x130] sm:$0xff]
    %v293 = vld [vmem:[#allocation7 + $0x138] sm:$0xff]
    %v294 = vld [vmem:[#allocation7 + $0x140] sm:$0xff]
    %v295 = vld [vmem:[#allocation7 + $0x148] sm:$0xff]
    %v296 = vld [vmem:[#allocation7 + $0x150] sm:$0xff]
    %v297 = vld [vmem:[#allocation7 + $0x158] sm:$0xff]
    %v298 = vld [vmem:[#allocation7 + $0x160] sm:$0xff]
    %v299 = vld [vmem:[#allocation7 + $0x168] sm:$0xff]
    %v300 = vld [vmem:[#allocation7 + $0x170] sm:$0xff]
    %v301 = vld [vmem:[#allocation7 + $0x178] sm:$0xff]
    %v302 = vld [vmem:[#allocation7 + $0x180] sm:$0xff]
    %v303 = vld [vmem:[#allocation7 + $0x188] sm:$0xff]
    %v304 = vld [vmem:[#allocation7 + $0x190] sm:$0xff]
    %v305 = vld [vmem:[#allocation7 + $0x198] sm:$0xff]
    %v306 = vld [vmem:[#allocation7 + $0x1a0] sm:$0xff]
    %v307 = vld [vmem:[#allocation7 + $0x1a8] sm:$0xff]
    %v308 = vld [vmem:[#allocation7 + $0x1b0] sm:$0xff]
    %v309 = vld [vmem:[#allocation7 + $0x1b8] sm:$0xff]
    %v310 = vld [vmem:[#allocation7 + $0x1c0] sm:$0xff]
    %v311 = vld [vmem:[#allocation7 + $0x1c8] sm:$0xff]
    %v312 = vld [vmem:[#allocation7 + $0x1d0] sm:$0xff]
    %v313 = vld [vmem:[#allocation7 + $0x1d8] sm:$0xff]
    %v314 = vld [vmem:[#allocation7 + $0x1e0] sm:$0xff]
    %v315 = vld [vmem:[#allocation7 + $0x1e8] sm:$0xff]
    %v316 = vld [vmem:[#allocation7 + $0x1f0] sm:$0xff]
    %v317 = vld [vmem:[#allocation7 + $0x1f8] sm:$0xff]
    %v318 = vld [vmem:[%s4] sm:$0x3]
    %v320 = vlaneseq
    %v321 = vshrl.u32 %v320, 7
    %v322 = vsub.s32 0, %v321
    %v323 = vrot.slane %v318, %v322
    %v324 = vlaneseq
    %v325 = vshrl.u32 %v324, 7
    %v326 = vsub.s32 1, %v325
    %v327 = vrot.slane %v318, %v326
    %330 = vmatprep.subr.mxu0 %v255
    %331 = vmatpush1.msra.mxu0 %v254
    %332 = vmatprep.subr.mxu0 %v257
    %333 = vmatpush1.msra.mxu0 %v256
    %334 = vmatprep.subr.mxu0 %v259
    %335 = vmatpush1.msra.mxu0 %v258
    %336 = vmatprep.subr.mxu0 %v261
    %337 = vmatpush1.msra.mxu0 %v260
    %338 = vmatprep.subr.mxu0 %v263
    %339 = vmatpush1.msra.mxu0 %v262
    %340 = vmatprep.subr.mxu0 %v265
    %341 = vmatpush1.msra.mxu0 %v264
    %342 = vmatprep.subr.mxu0 %v267
    %343 = vmatpush1.msra.mxu0 %v266
    %344 = vmatprep.subr.mxu0 %v269
    %345 = vmatpush1.msra.mxu0 %v268
    %346 = vmatprep.subr.mxu0 %v271
    %347 = vmatpush1.msra.mxu0 %v270
    %348 = vmatprep.subr.mxu0 %v273
    %349 = vmatpush1.msra.mxu0 %v272
    %350 = vmatprep.subr.mxu0 %v275
    %351 = vmatpush1.msra.mxu0 %v274
    %352 = vmatprep.subr.mxu0 %v277
    %353 = vmatpush1.msra.mxu0 %v276
    %354 = vmatprep.subr.mxu0 %v279
    %355 = vmatpush1.msra.mxu0 %v278
    %356 = vmatprep.subr.mxu0 %v281
    %357 = vmatpush1.msra.mxu0 %v280
    %358 = vmatprep.subr.mxu0 %v283
    %359 = vmatpush1.msra.mxu0 %v282
    %360 = vmatprep.subr.mxu0 %v285
    %361 = vmatpush1.msra.mxu0 %v284
    %362 = vmatprep.subr.mxu0 %v287
    %363 = vmatpush1.msra.mxu0 %v286
    %364 = vmatprep.subr.mxu0 %v289
    %365 = vmatpush1.msra.mxu0 %v288
    %366 = vmatprep.subr.mxu0 %v291
    %367 = vmatpush1.msra.mxu0 %v290
    %368 = vmatprep.subr.mxu0 %v293
    %369 = vmatpush1.msra.mxu0 %v292
    %370 = vmatprep.subr.mxu0 %v295
    %371 = vmatpush1.msra.mxu0 %v294
    %372 = vmatprep.subr.mxu0 %v297
    %373 = vmatpush1.msra.mxu0 %v296
    %374 = vmatprep.subr.mxu0 %v299
    %375 = vmatpush1.msra.mxu0 %v298
    %376 = vmatprep.subr.mxu0 %v301
    %377 = vmatpush1.msra.mxu0 %v300
    %378 = vmatprep.subr.mxu0 %v303
    %379 = vmatpush1.msra.mxu0 %v302
    %380 = vmatprep.subr.mxu0 %v305
    %381 = vmatpush1.msra.mxu0 %v304
    %382 = vmatprep.subr.mxu0 %v307
    %383 = vmatpush1.msra.mxu0 %v306
    %384 = vmatprep.subr.mxu0 %v309
    %385 = vmatpush1.msra.mxu0 %v308
    %386 = vmatprep.subr.mxu0 %v311
    %387 = vmatpush1.msra.mxu0 %v310
    %388 = vmatprep.subr.mxu0 %v313
    %389 = vmatpush1.msra.mxu0 %v312
    %390 = vmatprep.subr.mxu0 %v315
    %391 = vmatpush1.msra.mxu0 %v314
    %392 = vmatprep.subr.mxu0 %v317
    %393 = vmatpush1.msra.mxu0 %v316
    %394 = vmatprep.mubr.f32.mxu0 %v253
    %395 = vmatmul.mubr.f32.gmra.mrb[0].mxu0 %v252
    %v396 = vpop.f32.mrb[0].mxu0
    %v397 = vadd.f32 %v323, %v396
    %v398 = vpop.f32.mrb[0].mxu0
    %v399 = vadd.f32 %v327, %v398
    %400 = vdwg.mxu0
    %v401 = vmax.f32 %v397, 0.0
    %v402 = vmax.f32 %v399, 0.0
    %v403 = vld [vmem:[#allocation8] sm:$0xff]
    %v404 = vld [vmem:[#allocation8 + $0x8] sm:$0xff]
    %v405 = vld [vmem:[#allocation8 + $0x10] sm:$0xff]
    %v406 = vld [vmem:[#allocation8 + $0x18] sm:$0xff]
    %v407 = vld [vmem:[#allocation8 + $0x20] sm:$0xff]
    %v408 = vld [vmem:[#allocation8 + $0x28] sm:$0xff]
    %v409 = vld [vmem:[#allocation8 + $0x30] sm:$0xff]
    %v410 = vld [vmem:[#allocation8 + $0x38] sm:$0xff]
    %v411 = vld [vmem:[#allocation8 + $0x40] sm:$0xff]
    %v412 = vld [vmem:[#allocation8 + $0x48] sm:$0xff]
    %v413 = vld [vmem:[#allocation8 + $0x50] sm:$0xff]
    %v414 = vld [vmem:[#allocation8 + $0x58] sm:$0xff]
    %v415 = vld [vmem:[#allocation8 + $0x60] sm:$0xff]
    %v416 = vld [vmem:[#allocation8 + $0x68] sm:$0xff]
    %v417 = vld [vmem:[#allocation8 + $0x70] sm:$0xff]
    %v418 = vld [vmem:[#allocation8 + $0x78] sm:$0xff]
    %v419 = vld [vmem:[#allocation8 + $0x80] sm:$0xff]
    %v420 = vld [vmem:[#allocation8 + $0x88] sm:$0xff]
    %v421 = vld [vmem:[#allocation8 + $0x90] sm:$0xff]
    %v422 = vld [vmem:[#allocation8 + $0x98] sm:$0xff]
    %v423 = vld [vmem:[#allocation8 + $0xa0] sm:$0xff]
    %v424 = vld [vmem:[#allocation8 + $0xa8] sm:$0xff]
    %v425 = vld [vmem:[#allocation8 + $0xb0] sm:$0xff]
    %v426 = vld [vmem:[#allocation8 + $0xb8] sm:$0xff]
    %v427 = vld [vmem:[#allocation8 + $0xc0] sm:$0xff]
    %v428 = vld [vmem:[#allocation8 + $0xc8] sm:$0xff]
    %v429 = vld [vmem:[#allocation8 + $0xd0] sm:$0xff]
    %v430 = vld [vmem:[#allocation8 + $0xd8] sm:$0xff]
    %v431 = vld [vmem:[#allocation8 + $0xe0] sm:$0xff]
    %v432 = vld [vmem:[#allocation8 + $0xe8] sm:$0xff]
    %v433 = vld [vmem:[#allocation8 + $0xf0] sm:$0xff]
    %v434 = vld [vmem:[#allocation8 + $0xf8] sm:$0xff]
    %v435 = vld [vmem:[%s6] sm:$0x1]
    %v437 = vlaneseq
    %v438 = vshrl.u32 %v437, 7
    %v439 = vsub.s32 0, %v438
    %v440 = vrot.slane %v435, %v439
    %442 = vmatprep.subr.mxu0 0.0
    %443 = vmatpush1.msra.mxu0 %v403
    %444 = vmatprep.subr.mxu0 0.0
    %445 = vmatpush1.msra.mxu0 %v404
    %446 = vmatprep.subr.mxu0 0.0
    %447 = vmatpush1.msra.mxu0 %v405
    %448 = vmatprep.subr.mxu0 0.0
    %449 = vmatpush1.msra.mxu0 %v406
    %450 = vmatprep.subr.mxu0 0.0
    %451 = vmatpush1.msra.mxu0 %v407
    %452 = vmatprep.subr.mxu0 0.0
    %453 = vmatpush1.msra.mxu0 %v408
    %454 = vmatprep.subr.mxu0 0.0
    %455 = vmatpush1.msra.mxu0 %v409
    %456 = vmatprep.subr.mxu0 0.0
    %457 = vmatpush1.msra.mxu0 %v410
    %458 = vmatprep.subr.mxu0 0.0
    %459 = vmatpush1.msra.mxu0 %v411
    %460 = vmatprep.subr.mxu0 0.0
    %461 = vmatpush1.msra.mxu0 %v412
    %462 = vmatprep.subr.mxu0 0.0
    %463 = vmatpush1.msra.mxu0 %v413
    %464 = vmatprep.subr.mxu0 0.0
    %465 = vmatpush1.msra.mxu0 %v414
    %466 = vmatprep.subr.mxu0 0.0
    %467 = vmatpush1.msra.mxu0 %v415
    %468 = vmatprep.subr.mxu0 0.0
    %469 = vmatpush1.msra.mxu0 %v416
    %470 = vmatprep.subr.mxu0 0.0
    %471 = vmatpush1.msra.mxu0 %v417
    %472 = vmatprep.subr.mxu0 0.0
    %473 = vmatpush1.msra.mxu0 %v418
    %474 = vmatprep.subr.mxu0 0.0
    %475 = vmatpush1.msra.mxu0 %v419
    %476 = vmatprep.subr.mxu0 0.0
    %477 = vmatpush1.msra.mxu0 %v420
    %478 = vmatprep.subr.mxu0 0.0
    %479 = vmatpush1.msra.mxu0 %v421
    %480 = vmatprep.subr.mxu0 0.0
    %481 = vmatpush1.msra.mxu0 %v422
    %482 = vmatprep.subr.mxu0 0.0
    %483 = vmatpush1.msra.mxu0 %v423
    %484 = vmatprep.subr.mxu0 0.0
    %485 = vmatpush1.msra.mxu0 %v424
    %486 = vmatprep.subr.mxu0 0.0
    %487 = vmatpush1.msra.mxu0 %v425
    %488 = vmatprep.subr.mxu0 0.0
    %489 = vmatpush1.msra.mxu0 %v426
    %490 = vmatprep.subr.mxu0 0.0
    %491 = vmatpush1.msra.mxu0 %v427
    %492 = vmatprep.subr.mxu0 0.0
    %493 = vmatpush1.msra.mxu0 %v428
    %494 = vmatprep.subr.mxu0 0.0
    %495 = vmatpush1.msra.mxu0 %v429
    %496 = vmatprep.subr.mxu0 0.0
    %497 = vmatpush1.msra.mxu0 %v430
    %498 = vmatprep.subr.mxu0 0.0
    %499 = vmatpush1.msra.mxu0 %v431
    %500 = vmatprep.subr.mxu0 0.0
    %501 = vmatpush1.msra.mxu0 %v432
    %502 = vmatprep.subr.mxu0 0.0
    %503 = vmatpush1.msra.mxu0 %v433
    %504 = vmatprep.subr.mxu0 0.0
    %505 = vmatpush1.msra.mxu0 %v434
    %506 = vmatprep.mubr.f32.mxu0 %v402
    %507 = vmatmul.mubr.f32.gmra.mrb[0].mxu0 %v401
    %v508 = vpop.f32.mrb[0].mxu0
    %v509 = vadd.f32 %v440, %v508
    %v510 = vpop.f32.mrb[0].mxu0
    %511 = vdwg.mxu0
    %v512 = vadd.f32 %v235, %v509
    %513 = vst [vmem:[#allocation10] sm:$0xff] %v512
    // Predicated region
    $region46: #{tpu_custom_call.1} parent=1 // pred_check
      _
    $region47: #{tpu_custom_call.1} parent=1 // pred_check_branch
      %515 = sbr.rel (0) target = $region49
    $region48: #{tpu_custom_call.1} parent=1 // pred_region
      %s517 = ssub.s32 128, 128
      %518 = vsyncadd [#allocation4], %s517
      %s520 = sshll.u32 [#allocation10], 4
      %s521 = int_to_ptr.vmem [resolvable:$true] %s520
      %523 = dma.vmem_to_hbm [thread:$0]  %s521, 128, %s7, [#allocation4]
    $region49: #{tpu_custom_call.1} parent=1 // pred_fallthru
      _
    // Predicated region
    $region50: #{tpu_custom_call.1} parent=1 // pred_check
      _
    $region51: #{tpu_custom_call.1} parent=1 // pred_check_branch
      %525 = sbr.rel (0) target = $region53
    $region52: #{tpu_custom_call.1} parent=1 // pred_region
      %526 = dma.done [#allocation4], 128
    $region53: #{tpu_custom_call.1} parent=1 // pred_fallthru
      _
    %527 = vsyncpa [#allocation3], 1
    %528 = vsyncpa [#allocation6], 1
    %529 = vsyncpa [#allocation9], 1
    %530 = vsyncpa [#allocation4], 1

</llo_original>
